<compile_context>
chip_gen: v6e
topology: v6e:2x2x1
jax: 0.10.0
libtpu: 0.0.40
codegen_flags: <defaults>
</compile_context>

<pallas_src>
import math

import jax
import jax.numpy as jnp
from jax.experimental import pallas as pl
from jax.experimental.pallas import tpu as pltpu


def _round_up(n, m):
    return ((n + m - 1) // m) * m


def _default_block_b():
    """Generation-tuned batch tile (rows of f32 x per grid step)."""
    try:
        kind = jax.devices()[0].device_kind.lower()
    except Exception:
        kind = ""
    if "v5" in kind:
        return 1536   # 2 x 6 MiB f32 tiles (D=1024) inside v5e's 16 MiB scoped default
    return 3072       # v6e / v7x: 2 x 12 MiB f32 tiles, inside the 32 MiB scoped default


def gate_kernel(x_ref, w1_ref, b1_ref, w2_ref, b2_ref, o_ref):
    # fc1: in-kernel bf16 cast of the streamed f32 tile, bf16 x bf16 -> f32 on MXU.
    x_bf = x_ref[...].astype(jnp.bfloat16)
    h = jnp.dot(x_bf, w1_ref[...], preferred_element_type=jnp.float32)
    h = jnp.maximum(h + b1_ref[...], 0.0)

    # TODO(synk): nn.Dropout(0.1) is identity at inference; training-mode dropout
    # would use pltpu.prng_seed / pltpu.stateful_bernoulli here.

    # fc2 (tiny: H=32 -> E=8), f32.
    logits = jnp.dot(h, w2_ref[...], preferred_element_type=jnp.float32) + b2_ref[...]

    # Numerically-stable softmax over the expert (last) axis.
    m = jnp.max(logits, axis=-1, keepdims=True)
    e = jnp.exp(logits - m)
    denom = jnp.sum(e, axis=-1, keepdims=True)
    o_ref[...] = e * pl.reciprocal(denom)   # exact reciprocal (EUP slot, ~free)


def gate_forward(x, w1, b1, w2, b2, input_dim, *, block_b=None):
    """x: any-rank array (e.g. NCHW). Returns (B, n_experts) f32 softmax gate weights."""
    if block_b is None:
        block_b = _default_block_b()

    x = x.astype(jnp.float32)            # mirrors x.float(); no-op if already f32
    if x.ndim > 2:
        x = x.reshape(x.shape[0], -1)    # reshape only (no data movement pass)

    B, feat = x.shape
    D_full, H = w1.shape
    E = w2.shape[1]
    assert D_full == input_dim

    if feat >= input_dim:
        if feat == input_dim or input_dim % 128 == 0:
            # Truncation handled for free by the x BlockSpec window (columns [0, input_dim)).
            d_eff = input_dim
            w1_eff = w1
        else:
            # Rare fallback: lane-unaligned input_dim needs a wrapper slice.
            x = x[:, :input_dim]
            d_eff = input_dim
            w1_eff = w1
    else:
        # Pad-up case: zero-padded x columns contribute nothing to fc1, so slice
        # w1's rows instead of padding the streamed x (no extra HBM pass over x).
        d_eff = feat
        w1_eff = w1[:feat]

    w1_bf = w1_eff.astype(jnp.bfloat16)           # tiny one-time pass over weights only
    w2_f = w2.astype(jnp.float32)
    b1_2d = b1.reshape(1, H).astype(jnp.float32)
    b2_2d = b2.reshape(1, E).astype(jnp.float32)

    # Batch tile: multiple of 8 sublanes, capped by block_b; partial last block OK.
    tb = min(_round_up(block_b, 8), _round_up(B, 8))
    grid = (pl.cdiv(B, tb),)

    cost = pl.CostEstimate(
        flops=2 * B * d_eff * H + 2 * B * H * E,
        transcendentals=B * E,
        bytes_accessed=(B * d_eff * 4           # x (f32, read once)
                        + d_eff * H * 2         # w1 (bf16)
                        + H * E * 4 + (H + E) * 4
                        + B * E * 4),           # output
    )

    out = pl.pallas_call(
        gate_kernel,
        out_shape=jax.ShapeDtypeStruct((B, E), jnp.float32),
        grid=grid,
        in_specs=[
            pl.BlockSpec((tb, d_eff), lambda i: (i, 0)),   # x: streamed tile-by-tile
            pl.BlockSpec((d_eff, H), lambda i: (0, 0)),    # w1: VMEM-resident
            pl.BlockSpec((1, H), lambda i: (0, 0)),        # b1: VMEM-resident
            pl.BlockSpec((H, E), lambda i: (0, 0)),        # w2: VMEM-resident
            pl.BlockSpec((1, E), lambda i: (0, 0)),        # b2: VMEM-resident
        ],
        out_specs=pl.BlockSpec((tb, E), lambda i: (i, 0)),
        compiler_params=pltpu.CompilerParams(
            dimension_semantics=("parallel",),
        ),
        cost_estimate=cost,
    )(x, w1_bf, b1_2d, w2_f, b2_2d)

    return out


def init_gate_params(key, input_dim, n_experts, hidden_dim=32):
    """Deterministic init matching nn.Linear's U(-1/sqrt(fan_in), 1/sqrt(fan_in))."""
    k1, k2, k3, k4 = jax.random.split(key, 4)
    bound1 = 1.0 / math.sqrt(input_dim)
    bound2 = 1.0 / math.sqrt(hidden_dim)
    # stored transposed relative to PyTorch: (in, out)
    w1 = jax.random.uniform(k1, (input_dim, hidden_dim), jnp.float32, -bound1, bound1)
    b1 = jax.random.uniform(k2, (hidden_dim,), jnp.float32, -bound1, bound1)
    w2 = jax.random.uniform(k3, (hidden_dim, n_experts), jnp.float32, -bound2, bound2)
    b2 = jax.random.uniform(k4, (n_experts,), jnp.float32, -bound2, bound2)
    return w1, b1, w2, b2


def _reference(x, w1, b1, w2, b2, input_dim):
    xf = x.astype(jnp.float32)
    if xf.ndim > 2:
        xf = xf.reshape(xf.shape[0], -1)
    feat = xf.shape[-1]
    if feat > input_dim:
        xf = xf[:, :input_dim]
    elif feat < input_dim:
        xf = jnp.pad(xf, ((0, 0), (0, input_dim - feat)))
    h = jnp.maximum(xf @ w1 + b1, 0.0)
    return jax.nn.softmax(h @ w2 + b2, axis=-1)


if __name__ == "__main__":
    key = jax.random.PRNGKey(0)
    k_x, k_x2, k_x3, k_p = jax.random.split(key, 4)

    input_dim = 4 * 16 * 16          # 1024
    n_experts = 8
    hidden_dim = 32
    w1, b1, w2, b2 = init_gate_params(k_p, input_dim, n_experts, hidden_dim)

    # Case 1: small NCHW input (flatten path, exact feature match), partial batch tile.
    B, C, Hs, Ws = 2, 4, 16, 16
    x = jax.random.normal(k_x, (B, C, Hs, Ws), jnp.float32)
    out = jax.block_until_ready(gate_forward(x, w1, b1, w2, b2, input_dim))
    ref = _reference(x, w1, b1, w2, b2, input_dim)
    assert out.shape == (B, n_experts)
    # bf16 fc1 matmul -> relaxed tolerance vs the pure-f32 reference.
    assert jnp.allclose(out, ref, atol=1e-2, rtol=1e-2)
    assert jnp.allclose(jnp.sum(out, axis=-1), 1.0, atol=1e-3)

    # Case 2: 2-D input with fewer features (pad-up branch via w1-row slicing) and a
    # multi-tile grid (block_b=128 -> 3 batch tiles, last one partial).
    B2 = 300
    x2 = jax.random.normal(k_x2, (B2, 700), jnp.float32)
    out2 = jax.block_until_ready(
        gate_forward(x2, w1, b1, w2, b2, input_dim, block_b=128)
    )
    ref2 = _reference(x2, w1, b1, w2, b2, input_dim)
    assert out2.shape == (B2, n_experts)
    assert jnp.allclose(out2, ref2, atol=1e-2, rtol=1e-2)
    assert jnp.allclose(jnp.sum(out2, axis=-1), 1.0, atol=1e-3)

    # Case 3: more features than input_dim (truncation handled by BlockSpec window).
    B3 = 16
    x3 = jax.random.normal(k_x3, (B3, 1280), jnp.float32)
    out3 = jax.block_until_ready(gate_forward(x3, w1, b1, w2, b2, input_dim))
    ref3 = _reference(x3, w1, b1, w2, b2, input_dim)
    assert out3.shape == (B3, n_experts)
    assert jnp.allclose(out3, ref3, atol=1e-2, rtol=1e-2)
    assert jnp.allclose(jnp.sum(out3, axis=-1), 1.0, atol=1e-3)

    print("KERNEL_OK")
</pallas_src>

<mosaic_0001>
module attributes {stable_mosaic.version = 11 : i64} {
  func.func @gate_kernel(%arg0: i32, %arg1: memref<8x1024xf32, #tpu.memory_space<vmem>>, %arg2: memref<1024x32xbf16, #tpu.memory_space<vmem>>, %arg3: memref<1x32xf32, #tpu.memory_space<vmem>>, %arg4: memref<32x8xf32, #tpu.memory_space<vmem>>, %arg5: memref<1x8xf32, #tpu.memory_space<vmem>>, %arg6: memref<8x8xf32, #tpu.memory_space<vmem>>) attributes {dimension_semantics = [#tpu.dimension_semantics<parallel>], iteration_bounds = array<i64: 1>, scalar_prefetch = 0 : i64, scratch_operands = 0 : i64, tpu.core_type = #tpu.core_type<tc>, window_params = [{transform_indices = @transform_0, window_bounds = array<i64: 8, 1024>}, {pipeline_mode = #tpu.pipeline_mode<synchronous>, transform_indices = @transform_1, window_bounds = array<i64: 1024, 32>}, {pipeline_mode = #tpu.pipeline_mode<synchronous>, transform_indices = @transform_2, window_bounds = array<i64: 1, 32>}, {pipeline_mode = #tpu.pipeline_mode<synchronous>, transform_indices = @transform_3, window_bounds = array<i64: 32, 8>}, {pipeline_mode = #tpu.pipeline_mode<synchronous>, transform_indices = @transform_4, window_bounds = array<i64: 1, 8>}, {transform_indices = @transform_5, window_bounds = array<i64: 8, 8>}]} {
    %c0 = arith.constant 0 : index
    %c0_0 = arith.constant 0 : index
    %0 = vector.load %arg1[%c0, %c0_0] : memref<8x1024xf32, #tpu.memory_space<vmem>>, vector<8x1024xf32>
    %1 = arith.truncf %0 : vector<8x1024xf32> to vector<8x1024xbf16>
    %c0_1 = arith.constant 0 : index
    %c0_2 = arith.constant 0 : index
    %2 = vector.load %arg2[%c0_1, %c0_2] : memref<1024x32xbf16, #tpu.memory_space<vmem>>, vector<1024x32xbf16>
    %cst = arith.constant dense<0.000000e+00> : vector<8x32xf32>
    %3 = tpu.matmul %1, %2, %cst {dimension_numbers = #tpu.dot_dimension_numbers<[1], [0], [0], [1], [0, 0, 1, 1], [], []>} : vector<8x1024xbf16>, vector<1024x32xbf16>, vector<8x32xf32> -> vector<8x32xf32>
    %c0_3 = arith.constant 0 : index
    %c0_4 = arith.constant 0 : index
    %4 = vector.load %arg3[%c0_3, %c0_4] : memref<1x32xf32, #tpu.memory_space<vmem>>, vector<1x32xf32>
    %5 = vector.broadcast %4 : vector<1x32xf32> to vector<8x32xf32>
    %6 = arith.addf %3, %5 : vector<8x32xf32>
    %cst_5 = arith.constant 0.000000e+00 : f32
    %7 = vector.broadcast %cst_5 : f32 to vector<8x32xf32>
    %8 = arith.maximumf %6, %7 : vector<8x32xf32>
    %c0_6 = arith.constant 0 : index
    %c0_7 = arith.constant 0 : index
    %9 = vector.load %arg4[%c0_6, %c0_7] : memref<32x8xf32, #tpu.memory_space<vmem>>, vector<32x8xf32>
    %cst_8 = arith.constant dense<0.000000e+00> : vector<8x8xf32>
    %10 = tpu.matmul %8, %9, %cst_8 {dimension_numbers = #tpu.dot_dimension_numbers<[1], [0], [0], [1], [0, 0, 1, 1], [], []>} : vector<8x32xf32>, vector<32x8xf32>, vector<8x8xf32> -> vector<8x8xf32>
    %c0_9 = arith.constant 0 : index
    %c0_10 = arith.constant 0 : index
    %11 = vector.load %arg5[%c0_9, %c0_10] : memref<1x8xf32, #tpu.memory_space<vmem>>, vector<1x8xf32>
    %12 = vector.broadcast %11 : vector<1x8xf32> to vector<8x8xf32>
    %13 = arith.addf %10, %12 : vector<8x8xf32>
    %cst_11 = arith.constant dense<0xFF800000> : vector<8xf32>
    %14 = vector.multi_reduction <maximumf>, %13, %cst_11 [1] : vector<8x8xf32> to vector<8xf32>
    %15 = vector.shape_cast %14 : vector<8xf32> to vector<8x1xf32>
    %16 = vector.broadcast %15 : vector<8x1xf32> to vector<8x8xf32>
    %17 = arith.subf %13, %16 : vector<8x8xf32>
    %18 = math.exp %17 : vector<8x8xf32>
    %cst_12 = arith.constant dense<0.000000e+00> : vector<8xf32>
    %19 = vector.multi_reduction <add>, %18, %cst_12 [1] : vector<8x8xf32> to vector<8xf32>
    %20 = vector.shape_cast %19 : vector<8xf32> to vector<8x1xf32>
    %21 = tpu.reciprocal %20 : vector<8x1xf32> -> vector<8x1xf32>
    %22 = vector.broadcast %21 : vector<8x1xf32> to vector<8x8xf32>
    %23 = arith.mulf %18, %22 : vector<8x8xf32>
    %c0_13 = arith.constant 0 : index
    %c0_14 = arith.constant 0 : index
    %24 = vector.load %arg6[%c0_13, %c0_14] : memref<8x8xf32, #tpu.memory_space<vmem>>, vector<8x8xf32>
    tpu.vector_store %arg6[%c0_13, %c0_14], %23 {strides = array<i32>} : memref<8x8xf32, #tpu.memory_space<vmem>>, vector<8x8xf32>,
    return
  }
  func.func @transform_0(%arg0: i32) -> (i32, i32) {
    %c0_i32 = arith.constant 0 : i32
    %c0_i32_0 = arith.constant 0 : i32
    return %arg0, %c0_i32 : i32, i32
  }
  func.func @transform_1(%arg0: i32) -> (i32, i32) {
    %c0_i32 = arith.constant 0 : i32
    %c0_i32_0 = arith.constant 0 : i32
    %c0_i32_1 = arith.constant 0 : i32
    return %c0_i32, %c0_i32_0 : i32, i32
  }
  func.func @transform_2(%arg0: i32) -> (i32, i32) {
    %c0_i32 = arith.constant 0 : i32
    %c0_i32_0 = arith.constant 0 : i32
    %c0_i32_1 = arith.constant 0 : i32
    return %c0_i32, %c0_i32_0 : i32, i32
  }
  func.func @transform_3(%arg0: i32) -> (i32, i32) {
    %c0_i32 = arith.constant 0 : i32
    %c0_i32_0 = arith.constant 0 : i32
    %c0_i32_1 = arith.constant 0 : i32
    return %c0_i32, %c0_i32_0 : i32, i32
  }
  func.func @transform_4(%arg0: i32) -> (i32, i32) {
    %c0_i32 = arith.constant 0 : i32
    %c0_i32_0 = arith.constant 0 : i32
    %c0_i32_1 = arith.constant 0 : i32
    return %c0_i32, %c0_i32_0 : i32, i32
  }
  func.func @transform_5(%arg0: i32) -> (i32, i32) {
    %c0_i32 = arith.constant 0 : i32
    %c0_i32_0 = arith.constant 0 : i32
    return %arg0, %c0_i32 : i32, i32
  }
}

</mosaic_0001>

<llo_original>
// kernel: tpu_custom_call.1
$region0: #{tpu_custom_call.1}
  #allocation0 [shape = 'u32[]', space=smem, size = 0x4, offset = 0x4, fixed_abs, tag = 'smem constant byte address 0x4 - core index']
  #allocation1 [shape = 'u32[144,128]{1,0:T(1,128)}', space=vmem, size = 0x12000, scoped, tag = 'internal scratch']
  %s0 = inlined_call_operand.vmem [shape: f32[2,1024], index: 0, kind: input, shape index: {}]
  %s1 = inlined_call_operand.vmem [shape: bf16[1024,32], index: 1, kind: input, shape index: {}]
  %s2 = inlined_call_operand.vmem [shape: f32[1,32], index: 2, kind: input, shape index: {}]
  %s3 = inlined_call_operand.vmem [shape: f32[32,8], index: 3, kind: input, shape index: {}]
  %s4 = inlined_call_operand.vmem [shape: f32[1,8], index: 4, kind: input, shape index: {}]
  %s5 = inlined_call_operand.hbm [shape: f32[2,8], index: 5, kind: output, shape index: {}]
  %s6 = sld [smem:[#allocation0]]
  $region30: #{tpu_custom_call.1} parent=0
    _
  %s8 = ssub.s32 1, %s6
  %s9 = scalar_select 0, %s8, %s6
  $region1: #{tpu_custom_call.1} parent=0
    #allocation2 [shape = 'u8[4096]{0}', space=vmem, size = 0x1000, scoped, tag = 'output window, operand 0, single buffered']
    #allocation3 [shape = 's32[1]{0}', space=sflag, size = 0x4, scoped, tag = 'scoped memory for tpu_custom_call.1']
    %10 = vsyncpa [#allocation3], 0
    // Predicated region
    $region2: #{tpu_custom_call.1} parent=1 // pred_check
      _
    $region3: #{tpu_custom_call.1} parent=1 // pred_check_branch
      %12 = sbr.rel (0) target = $region5
    $region4: #{tpu_custom_call.1} parent=1 // pred_region
      _
    $region5: #{tpu_custom_call.1} parent=1 // pred_fallthru
      _
    // Predicated region
    $region6: #{tpu_custom_call.1} parent=1 // pred_check
      _
    $region7: #{tpu_custom_call.1} parent=1 // pred_check_branch
      %14 = sbr.rel (0) target = $region9
    $region8: #{tpu_custom_call.1} parent=1 // pred_region
      _
    $region9: #{tpu_custom_call.1} parent=1 // pred_fallthru
      _
    // Predicated region
    $region10: #{tpu_custom_call.1} parent=1 // pred_check
      _
    $region11: #{tpu_custom_call.1} parent=1 // pred_check_branch
      %16 = sbr.rel (0) target = $region13
    $region12: #{tpu_custom_call.1} parent=1 // pred_region
      _
    $region13: #{tpu_custom_call.1} parent=1 // pred_fallthru
      _
    // Predicated region
    $region14: #{tpu_custom_call.1} parent=1 // pred_check
      _
    $region15: #{tpu_custom_call.1} parent=1 // pred_check_branch
      %18 = sbr.rel (0) target = $region17
    $region16: #{tpu_custom_call.1} parent=1 // pred_region
      _
    $region17: #{tpu_custom_call.1} parent=1 // pred_fallthru
      _
    // Predicated region
    $region18: #{tpu_custom_call.1} parent=1 // pred_check
      _
    $region19: #{tpu_custom_call.1} parent=1 // pred_check_branch
      %20 = sbr.rel (0) target = $region21
    $region20: #{tpu_custom_call.1} parent=1 // pred_region
      _
    $region21: #{tpu_custom_call.1} parent=1 // pred_fallthru
      _
    %v22 = vld [vmem:[%s0] sm:$0xff]
    %v23 = vld [vmem:[%s0 + $0x8] sm:$0xff]
    %v24 = vld [vmem:[%s0 + $0x10] sm:$0xff]
    %v25 = vld [vmem:[%s0 + $0x18] sm:$0xff]
    %v26 = vld [vmem:[%s0 + $0x20] sm:$0xff]
    %v27 = vld [vmem:[%s0 + $0x28] sm:$0xff]
    %v28 = vld [vmem:[%s0 + $0x30] sm:$0xff]
    %v29 = vld [vmem:[%s0 + $0x38] sm:$0xff]
    %v38 = vcombine.low %v22, %v24
    %v39 = vcombine.high %v22, %v24
    %v40 = vcombine.low %v26, %v28
    %v41 = vcombine.high %v26, %v28
    %v43 = vunpack.c.l.s4 1983009808
    %v44 = vunpack.c.0.s8 %v43
    %v45 = vlaneseq
    %v46 = vshrl.u32 %v45, 7
    %v47 = vsub.s32 %v44, %v46
    %v48 = vrot.slane %v38, %v47
    %v50 = vunpack.c.l.s4 1983009808
    %v51 = vunpack.c.0.s8 %v50
    %v52 = vlaneseq
    %v53 = vshrl.u32 %v52, 7
    %v54 = vsub.s32 %v51, %v53
    %v55 = vrot.slane %v39, %v54
    %v57 = vunpack.c.l.s4 1983009808
    %v58 = vunpack.c.0.s8 %v57
    %v59 = vlaneseq
    %v60 = vshrl.u32 %v59, 7
    %v61 = vsub.s32 %v58, %v60
    %v62 = vrot.slane %v40, %v61
    %v64 = vunpack.c.l.s4 1983009808
    %v65 = vunpack.c.0.s8 %v64
    %v66 = vlaneseq
    %v67 = vshrl.u32 %v66, 7
    %v68 = vsub.s32 %v65, %v67
    %v69 = vrot.slane %v41, %v68
    %v70 = vcombine.low %v48, %v62
    %v71 = vcombine.high %v48, %v62
    %v72 = vcombine.low %v55, %v69
    %v73 = vcombine.high %v55, %v69
    %v74 = vcombine.low %v23, %v25
    %v75 = vcombine.high %v23, %v25
    %v76 = vcombine.low %v27, %v29
    %v77 = vcombine.high %v27, %v29
    %v79 = vunpack.c.l.s4 1983009808
    %v80 = vunpack.c.0.s8 %v79
    %v81 = vlaneseq
    %v82 = vshrl.u32 %v81, 7
    %v83 = vsub.s32 %v80, %v82
    %v84 = vrot.slane %v74, %v83
    %v86 = vunpack.c.l.s4 1983009808
    %v87 = vunpack.c.0.s8 %v86
    %v88 = vlaneseq
    %v89 = vshrl.u32 %v88, 7
    %v90 = vsub.s32 %v87, %v89
    %v91 = vrot.slane %v75, %v90
    %v93 = vunpack.c.l.s4 1983009808
    %v94 = vunpack.c.0.s8 %v93
    %v95 = vlaneseq
    %v96 = vshrl.u32 %v95, 7
    %v97 = vsub.s32 %v94, %v96
    %v98 = vrot.slane %v76, %v97
    %v100 = vunpack.c.l.s4 1983009808
    %v101 = vunpack.c.0.s8 %v100
    %v102 = vlaneseq
    %v103 = vshrl.u32 %v102, 7
    %v104 = vsub.s32 %v101, %v103
    %v105 = vrot.slane %v77, %v104
    %v106 = vcombine.low %v84, %v98
    %v107 = vcombine.high %v84, %v98
    %v108 = vcombine.low %v91, %v105
    %v109 = vcombine.high %v91, %v105
    %v118 = vpack.c.bf16 %v70, %v70
    %v119 = vpack.c.bf16 %v71, %v71
    %v120 = vpack.c.bf16 %v72, %v72
    %v121 = vpack.c.bf16 %v73, %v73
    %v122 = vpack.c.bf16 %v106, %v106
    %v123 = vpack.c.bf16 %v107, %v107
    %v124 = vpack.c.bf16 %v108, %v108
    %v125 = vpack.c.bf16 %v109, %v109
    %v126 = vld [vmem:[%s1] sm:$0xf]
    %v127 = vld [vmem:[%s1 + $0x4] sm:$0xf]
    %v128 = vld [vmem:[%s1 + $0x8] sm:$0xf]
    %v129 = vld [vmem:[%s1 + $0xc] sm:$0xf]
    %v130 = vld [vmem:[%s1 + $0x10] sm:$0xf]
    %v131 = vld [vmem:[%s1 + $0x14] sm:$0xf]
    %v132 = vld [vmem:[%s1 + $0x18] sm:$0xf]
    %v133 = vld [vmem:[%s1 + $0x1c] sm:$0xf]
    %v134 = vld [vmem:[%s1 + $0x20] sm:$0xf]
    %v135 = vld [vmem:[%s1 + $0x24] sm:$0xf]
    %v136 = vld [vmem:[%s1 + $0x28] sm:$0xf]
    %v137 = vld [vmem:[%s1 + $0x2c] sm:$0xf]
    %v138 = vld [vmem:[%s1 + $0x30] sm:$0xf]
    %v139 = vld [vmem:[%s1 + $0x34] sm:$0xf]
    %v140 = vld [vmem:[%s1 + $0x38] sm:$0xf]
    %v141 = vld [vmem:[%s1 + $0x3c] sm:$0xf]
    %v142 = vld [vmem:[%s1 + $0x40] sm:$0xf]
    %v143 = vld [vmem:[%s1 + $0x44] sm:$0xf]
    %v144 = vld [vmem:[%s1 + $0x48] sm:$0xf]
    %v145 = vld [vmem:[%s1 + $0x4c] sm:$0xf]
    %v146 = vld [vmem:[%s1 + $0x50] sm:$0xf]
    %v147 = vld [vmem:[%s1 + $0x54] sm:$0xf]
    %v148 = vld [vmem:[%s1 + $0x58] sm:$0xf]
    %v149 = vld [vmem:[%s1 + $0x5c] sm:$0xf]
    %v150 = vld [vmem:[%s1 + $0x60] sm:$0xf]
    %v151 = vld [vmem:[%s1 + $0x64] sm:$0xf]
    %v152 = vld [vmem:[%s1 + $0x68] sm:$0xf]
    %v153 = vld [vmem:[%s1 + $0x6c] sm:$0xf]
    %v154 = vld [vmem:[%s1 + $0x70] sm:$0xf]
    %v155 = vld [vmem:[%s1 + $0x74] sm:$0xf]
    %v156 = vld [vmem:[%s1 + $0x78] sm:$0xf]
    %v157 = vld [vmem:[%s1 + $0x7c] sm:$0xf]
    %v158 = vld [vmem:[%s1 + $0x80] sm:$0xf]
    %v159 = vld [vmem:[%s1 + $0x84] sm:$0xf]
    %v160 = vld [vmem:[%s1 + $0x88] sm:$0xf]
    %v161 = vld [vmem:[%s1 + $0x8c] sm:$0xf]
    %v162 = vld [vmem:[%s1 + $0x90] sm:$0xf]
    %v163 = vld [vmem:[%s1 + $0x94] sm:$0xf]
    %v164 = vld [vmem:[%s1 + $0x98] sm:$0xf]
    %v165 = vld [vmem:[%s1 + $0x9c] sm:$0xf]
    %v166 = vld [vmem:[%s1 + $0xa0] sm:$0xf]
    %v167 = vld [vmem:[%s1 + $0xa4] sm:$0xf]
    %v168 = vld [vmem:[%s1 + $0xa8] sm:$0xf]
    %v169 = vld [vmem:[%s1 + $0xac] sm:$0xf]
    %v170 = vld [vmem:[%s1 + $0xb0] sm:$0xf]
    %v171 = vld [vmem:[%s1 + $0xb4] sm:$0xf]
    %v172 = vld [vmem:[%s1 + $0xb8] sm:$0xf]
    %v173 = vld [vmem:[%s1 + $0xbc] sm:$0xf]
    %v174 = vld [vmem:[%s1 + $0xc0] sm:$0xf]
    %v175 = vld [vmem:[%s1 + $0xc4] sm:$0xf]
    %v176 = vld [vmem:[%s1 + $0xc8] sm:$0xf]
    %v177 = vld [vmem:[%s1 + $0xcc] sm:$0xf]
    %v178 = vld [vmem:[%s1 + $0xd0] sm:$0xf]
    %v179 = vld [vmem:[%s1 + $0xd4] sm:$0xf]
    %v180 = vld [vmem:[%s1 + $0xd8] sm:$0xf]
    %v181 = vld [vmem:[%s1 + $0xdc] sm:$0xf]
    %v182 = vld [vmem:[%s1 + $0xe0] sm:$0xf]
    %v183 = vld [vmem:[%s1 + $0xe4] sm:$0xf]
    %v184 = vld [vmem:[%s1 + $0xe8] sm:$0xf]
    %v185 = vld [vmem:[%s1 + $0xec] sm:$0xf]
    %v186 = vld [vmem:[%s1 + $0xf0] sm:$0xf]
    %v187 = vld [vmem:[%s1 + $0xf4] sm:$0xf]
    %v188 = vld [vmem:[%s1 + $0xf8] sm:$0xf]
    %v189 = vld [vmem:[%s1 + $0xfc] sm:$0xf]
    %v190 = vld [vmem:[%s1 + $0x100] sm:$0xf]
    %v191 = vld [vmem:[%s1 + $0x104] sm:$0xf]
    %v192 = vld [vmem:[%s1 + $0x108] sm:$0xf]
    %v193 = vld [vmem:[%s1 + $0x10c] sm:$0xf]
    %v194 = vld [vmem:[%s1 + $0x110] sm:$0xf]
    %v195 = vld [vmem:[%s1 + $0x114] sm:$0xf]
    %v196 = vld [vmem:[%s1 + $0x118] sm:$0xf]
    %v197 = vld [vmem:[%s1 + $0x11c] sm:$0xf]
    %v198 = vld [vmem:[%s1 + $0x120] sm:$0xf]
    %v199 = vld [vmem:[%s1 + $0x124] sm:$0xf]
    %v200 = vld [vmem:[%s1 + $0x128] sm:$0xf]
    %v201 = vld [vmem:[%s1 + $0x12c] sm:$0xf]
    %v202 = vld [vmem:[%s1 + $0x130] sm:$0xf]
    %v203 = vld [vmem:[%s1 + $0x134] sm:$0xf]
    %v204 = vld [vmem:[%s1 + $0x138] sm:$0xf]
    %v205 = vld [vmem:[%s1 + $0x13c] sm:$0xf]
    %v206 = vld [vmem:[%s1 + $0x140] sm:$0xf]
    %v207 = vld [vmem:[%s1 + $0x144] sm:$0xf]
    %v208 = vld [vmem:[%s1 + $0x148] sm:$0xf]
    %v209 = vld [vmem:[%s1 + $0x14c] sm:$0xf]
    %v210 = vld [vmem:[%s1 + $0x150] sm:$0xf]
    %v211 = vld [vmem:[%s1 + $0x154] sm:$0xf]
    %v212 = vld [vmem:[%s1 + $0x158] sm:$0xf]
    %v213 = vld [vmem:[%s1 + $0x15c] sm:$0xf]
    %v214 = vld [vmem:[%s1 + $0x160] sm:$0xf]
    %v215 = vld [vmem:[%s1 + $0x164] sm:$0xf]
    %v216 = vld [vmem:[%s1 + $0x168] sm:$0xf]
    %v217 = vld [vmem:[%s1 + $0x16c] sm:$0xf]
    %v218 = vld [vmem:[%s1 + $0x170] sm:$0xf]
    %v219 = vld [vmem:[%s1 + $0x174] sm:$0xf]
    %v220 = vld [vmem:[%s1 + $0x178] sm:$0xf]
    %v221 = vld [vmem:[%s1 + $0x17c] sm:$0xf]
    %v222 = vld [vmem:[%s1 + $0x180] sm:$0xf]
    %v223 = vld [vmem:[%s1 + $0x184] sm:$0xf]
    %v224 = vld [vmem:[%s1 + $0x188] sm:$0xf]
    %v225 = vld [vmem:[%s1 + $0x18c] sm:$0xf]
    %v226 = vld [vmem:[%s1 + $0x190] sm:$0xf]
    %v227 = vld [vmem:[%s1 + $0x194] sm:$0xf]
    %v228 = vld [vmem:[%s1 + $0x198] sm:$0xf]
    %v229 = vld [vmem:[%s1 + $0x19c] sm:$0xf]
    %v230 = vld [vmem:[%s1 + $0x1a0] sm:$0xf]
    %v231 = vld [vmem:[%s1 + $0x1a4] sm:$0xf]
    %v232 = vld [vmem:[%s1 + $0x1a8] sm:$0xf]
    %v233 = vld [vmem:[%s1 + $0x1ac] sm:$0xf]
    %v234 = vld [vmem:[%s1 + $0x1b0] sm:$0xf]
    %v235 = vld [vmem:[%s1 + $0x1b4] sm:$0xf]
    %v236 = vld [vmem:[%s1 + $0x1b8] sm:$0xf]
    %v237 = vld [vmem:[%s1 + $0x1bc] sm:$0xf]
    %v238 = vld [vmem:[%s1 + $0x1c0] sm:$0xf]
    %v239 = vld [vmem:[%s1 + $0x1c4] sm:$0xf]
    %v240 = vld [vmem:[%s1 + $0x1c8] sm:$0xf]
    %v241 = vld [vmem:[%s1 + $0x1cc] sm:$0xf]
    %v242 = vld [vmem:[%s1 + $0x1d0] sm:$0xf]
    %v243 = vld [vmem:[%s1 + $0x1d4] sm:$0xf]
    %v244 = vld [vmem:[%s1 + $0x1d8] sm:$0xf]
    %v245 = vld [vmem:[%s1 + $0x1dc] sm:$0xf]
    %v246 = vld [vmem:[%s1 + $0x1e0] sm:$0xf]
    %v247 = vld [vmem:[%s1 + $0x1e4] sm:$0xf]
    %v248 = vld [vmem:[%s1 + $0x1e8] sm:$0xf]
    %v249 = vld [vmem:[%s1 + $0x1ec] sm:$0xf]
    %v250 = vld [vmem:[%s1 + $0x1f0] sm:$0xf]
    %v251 = vld [vmem:[%s1 + $0x1f4] sm:$0xf]
    %v252 = vld [vmem:[%s1 + $0x1f8] sm:$0xf]
    %v253 = vld [vmem:[%s1 + $0x1fc] sm:$0xf]
    %v254 = vld [vmem:[%s2] sm:$0x1]
    %v256 = vlaneseq
    %v257 = vshrl.u32 %v256, 7
    %v258 = vsub.s32 0, %v257
    %v259 = vrot.slane %v254, %v258
    %v389 = vunpack.c.l.b16 %v126
    %v390 = vunpack.c.l.b16 %v127
    %v391 = vunpack.c.l.b16 %v128
    %v392 = vunpack.c.l.b16 %v129
    %v393 = vunpack.c.l.b16 %v130
    %v394 = vunpack.c.l.b16 %v131
    %v395 = vunpack.c.l.b16 %v132
    %v396 = vunpack.c.l.b16 %v133
    %v397 = vunpack.c.l.b16 %v134
    %v398 = vunpack.c.l.b16 %v135
    %v399 = vunpack.c.l.b16 %v136
    %v400 = vunpack.c.l.b16 %v137
    %v401 = vunpack.c.l.b16 %v138
    %v402 = vunpack.c.l.b16 %v139
    %v403 = vunpack.c.l.b16 %v140
    %v404 = vunpack.c.l.b16 %v141
    %v405 = vunpack.c.l.b16 %v142
    %v406 = vunpack.c.l.b16 %v143
    %v407 = vunpack.c.l.b16 %v144
    %v408 = vunpack.c.l.b16 %v145
    %v409 = vunpack.c.l.b16 %v146
    %v410 = vunpack.c.l.b16 %v147
    %v411 = vunpack.c.l.b16 %v148
    %v412 = vunpack.c.l.b16 %v149
    %v413 = vunpack.c.l.b16 %v150
    %v414 = vunpack.c.l.b16 %v151
    %v415 = vunpack.c.l.b16 %v152
    %v416 = vunpack.c.l.b16 %v153
    %v417 = vunpack.c.l.b16 %v154
    %v418 = vunpack.c.l.b16 %v155
    %v419 = vunpack.c.l.b16 %v156
    %v420 = vunpack.c.l.b16 %v157
    %v421 = vunpack.c.l.b16 %v158
    %v422 = vunpack.c.l.b16 %v159
    %v423 = vunpack.c.l.b16 %v160
    %v424 = vunpack.c.l.b16 %v161
    %v425 = vunpack.c.l.b16 %v162
    %v426 = vunpack.c.l.b16 %v163
    %v427 = vunpack.c.l.b16 %v164
    %v428 = vunpack.c.l.b16 %v165
    %v429 = vunpack.c.l.b16 %v166
    %v430 = vunpack.c.l.b16 %v167
    %v431 = vunpack.c.l.b16 %v168
    %v432 = vunpack.c.l.b16 %v169
    %v433 = vunpack.c.l.b16 %v170
    %v434 = vunpack.c.l.b16 %v171
    %v435 = vunpack.c.l.b16 %v172
    %v436 = vunpack.c.l.b16 %v173
    %v437 = vunpack.c.l.b16 %v174
    %v438 = vunpack.c.l.b16 %v175
    %v439 = vunpack.c.l.b16 %v176
    %v440 = vunpack.c.l.b16 %v177
    %v441 = vunpack.c.l.b16 %v178
    %v442 = vunpack.c.l.b16 %v179
    %v443 = vunpack.c.l.b16 %v180
    %v444 = vunpack.c.l.b16 %v181
    %v445 = vunpack.c.l.b16 %v182
    %v446 = vunpack.c.l.b16 %v183
    %v447 = vunpack.c.l.b16 %v184
    %v448 = vunpack.c.l.b16 %v185
    %v449 = vunpack.c.l.b16 %v186
    %v450 = vunpack.c.l.b16 %v187
    %v451 = vunpack.c.l.b16 %v188
    %v452 = vunpack.c.l.b16 %v189
    %v453 = vunpack.c.l.b16 %v190
    %v454 = vunpack.c.l.b16 %v191
    %v455 = vunpack.c.l.b16 %v192
    %v456 = vunpack.c.l.b16 %v193
    %v457 = vunpack.c.l.b16 %v194
    %v458 = vunpack.c.l.b16 %v195
    %v459 = vunpack.c.l.b16 %v196
    %v460 = vunpack.c.l.b16 %v197
    %v461 = vunpack.c.l.b16 %v198
    %v462 = vunpack.c.l.b16 %v199
    %v463 = vunpack.c.l.b16 %v200
    %v464 = vunpack.c.l.b16 %v201
    %v465 = vunpack.c.l.b16 %v202
    %v466 = vunpack.c.l.b16 %v203
    %v467 = vunpack.c.l.b16 %v204
    %v468 = vunpack.c.l.b16 %v205
    %v469 = vunpack.c.l.b16 %v206
    %v470 = vunpack.c.l.b16 %v207
    %v471 = vunpack.c.l.b16 %v208
    %v472 = vunpack.c.l.b16 %v209
    %v473 = vunpack.c.l.b16 %v210
    %v474 = vunpack.c.l.b16 %v211
    %v475 = vunpack.c.l.b16 %v212
    %v476 = vunpack.c.l.b16 %v213
    %v477 = vunpack.c.l.b16 %v214
    %v478 = vunpack.c.l.b16 %v215
    %v479 = vunpack.c.l.b16 %v216
    %v480 = vunpack.c.l.b16 %v217
    %v481 = vunpack.c.l.b16 %v218
    %v482 = vunpack.c.l.b16 %v219
    %v483 = vunpack.c.l.b16 %v220
    %v484 = vunpack.c.l.b16 %v221
    %v485 = vunpack.c.l.b16 %v222
    %v486 = vunpack.c.l.b16 %v223
    %v487 = vunpack.c.l.b16 %v224
    %v488 = vunpack.c.l.b16 %v225
    %v489 = vunpack.c.l.b16 %v226
    %v490 = vunpack.c.l.b16 %v227
    %v491 = vunpack.c.l.b16 %v228
    %v492 = vunpack.c.l.b16 %v229
    %v493 = vunpack.c.l.b16 %v230
    %v494 = vunpack.c.l.b16 %v231
    %v495 = vunpack.c.l.b16 %v232
    %v496 = vunpack.c.l.b16 %v233
    %v497 = vunpack.c.l.b16 %v234
    %v498 = vunpack.c.l.b16 %v235
    %v499 = vunpack.c.l.b16 %v236
    %v500 = vunpack.c.l.b16 %v237
    %v501 = vunpack.c.l.b16 %v238
    %v502 = vunpack.c.l.b16 %v239
    %v503 = vunpack.c.l.b16 %v240
    %v504 = vunpack.c.l.b16 %v241
    %v505 = vunpack.c.l.b16 %v242
    %v506 = vunpack.c.l.b16 %v243
    %v507 = vunpack.c.l.b16 %v244
    %v508 = vunpack.c.l.b16 %v245
    %v509 = vunpack.c.l.b16 %v246
    %v510 = vunpack.c.l.b16 %v247
    %v511 = vunpack.c.l.b16 %v248
    %v512 = vunpack.c.l.b16 %v249
    %v513 = vunpack.c.l.b16 %v250
    %v514 = vunpack.c.l.b16 %v251
    %v515 = vunpack.c.l.b16 %v252
    %v516 = vunpack.c.l.b16 %v253
    %v517 = vpack.c.b16 %v390, %v389
    %v518 = vpack.c.b16 %v392, %v391
    %v519 = vpack.c.b16 %v394, %v393
    %v520 = vpack.c.b16 %v396, %v395
    %v521 = vpack.c.b16 %v398, %v397
    %v522 = vpack.c.b16 %v400, %v399
    %v523 = vpack.c.b16 %v402, %v401
    %v524 = vpack.c.b16 %v404, %v403
    %v525 = vpack.c.b16 %v406, %v405
    %v526 = vpack.c.b16 %v408, %v407
    %v527 = vpack.c.b16 %v410, %v409
    %v528 = vpack.c.b16 %v412, %v411
    %v529 = vpack.c.b16 %v414, %v413
    %v530 = vpack.c.b16 %v416, %v415
    %v531 = vpack.c.b16 %v418, %v417
    %v532 = vpack.c.b16 %v420, %v419
    %v533 = vpack.c.b16 %v422, %v421
    %v534 = vpack.c.b16 %v424, %v423
    %v535 = vpack.c.b16 %v426, %v425
    %v536 = vpack.c.b16 %v428, %v427
    %v537 = vpack.c.b16 %v430, %v429
    %v538 = vpack.c.b16 %v432, %v431
    %v539 = vpack.c.b16 %v434, %v433
    %v540 = vpack.c.b16 %v436, %v435
    %v541 = vpack.c.b16 %v438, %v437
    %v542 = vpack.c.b16 %v440, %v439
    %v543 = vpack.c.b16 %v442, %v441
    %v544 = vpack.c.b16 %v444, %v443
    %v545 = vpack.c.b16 %v446, %v445
    %v546 = vpack.c.b16 %v448, %v447
    %v547 = vpack.c.b16 %v450, %v449
    %v548 = vpack.c.b16 %v452, %v451
    %v549 = vpack.c.b16 %v454, %v453
    %v550 = vpack.c.b16 %v456, %v455
    %v551 = vpack.c.b16 %v458, %v457
    %v552 = vpack.c.b16 %v460, %v459
    %v553 = vpack.c.b16 %v462, %v461
    %v554 = vpack.c.b16 %v464, %v463
    %v555 = vpack.c.b16 %v466, %v465
    %v556 = vpack.c.b16 %v468, %v467
    %v557 = vpack.c.b16 %v470, %v469
    %v558 = vpack.c.b16 %v472, %v471
    %v559 = vpack.c.b16 %v474, %v473
    %v560 = vpack.c.b16 %v476, %v475
    %v561 = vpack.c.b16 %v478, %v477
    %v562 = vpack.c.b16 %v480, %v479
    %v563 = vpack.c.b16 %v482, %v481
    %v564 = vpack.c.b16 %v484, %v483
    %v565 = vpack.c.b16 %v486, %v485
    %v566 = vpack.c.b16 %v488, %v487
    %v567 = vpack.c.b16 %v490, %v489
    %v568 = vpack.c.b16 %v492, %v491
    %v569 = vpack.c.b16 %v494, %v493
    %v570 = vpack.c.b16 %v496, %v495
    %v571 = vpack.c.b16 %v498, %v497
    %v572 = vpack.c.b16 %v500, %v499
    %v573 = vpack.c.b16 %v502, %v501
    %v574 = vpack.c.b16 %v504, %v503
    %v575 = vpack.c.b16 %v506, %v505
    %v576 = vpack.c.b16 %v508, %v507
    %v577 = vpack.c.b16 %v510, %v509
    %v578 = vpack.c.b16 %v512, %v511
    %v579 = vpack.c.b16 %v514, %v513
    %v580 = vpack.c.b16 %v516, %v515
    %645 = vmatprep.subr.bf16.mxu0 0
    %646 = vmatpush1.bf16.msra.mxu0 %v524
    %647 = vmatprep.subr.bf16.mxu0 0
    %648 = vmatpush1.bf16.msra.mxu0 %v523
    %649 = vmatprep.subr.bf16.mxu0 0
    %650 = vmatpush1.bf16.msra.mxu0 %v522
    %651 = vmatprep.subr.bf16.mxu0 0
    %652 = vmatpush1.bf16.msra.mxu0 %v521
    %653 = vmatprep.subr.bf16.mxu0 0
    %654 = vmatpush1.bf16.msra.mxu0 %v520
    %655 = vmatprep.subr.bf16.mxu0 0
    %656 = vmatpush1.bf16.msra.mxu0 %v519
    %657 = vmatprep.subr.bf16.mxu0 0
    %658 = vmatpush1.bf16.msra.mxu0 %v518
    %659 = vmatprep.subr.bf16.mxu0 0
    %660 = vmatpush1.bf16.msra.mxu0 %v517
    %661 = vmatprep.subr.bf16.mxu0 0
    %662 = vmatpush2.bf16.msra.mxu0 %v532
    %663 = vmatprep.subr.bf16.mxu0 0
    %664 = vmatpush2.bf16.msra.mxu0 %v531
    %665 = vmatprep.subr.bf16.mxu0 0
    %666 = vmatpush2.bf16.msra.mxu0 %v530
    %667 = vmatprep.subr.bf16.mxu0 0
    %668 = vmatpush2.bf16.msra.mxu0 %v529
    %669 = vmatprep.subr.bf16.mxu0 0
    %670 = vmatpush2.bf16.msra.mxu0 %v528
    %671 = vmatprep.subr.bf16.mxu0 0
    %672 = vmatpush2.bf16.msra.mxu0 %v527
    %673 = vmatprep.subr.bf16.mxu0 0
    %674 = vmatpush2.bf16.msra.mxu0 %v526
    %675 = vmatprep.subr.bf16.mxu0 0
    %676 = vmatpush2.bf16.msra.mxu0 %v525
    %677 = vmatprep.mubr.bf16.mxu0 %v119
    %678 = vmatmul.mubr.bf16.gmra.mxu0 %v118
    %v679 = vpop.f32.mrf.mxu0
    %v680 = vadd.f32 %v259, %v679
    %v681 = vpop.f32.mrf.mxu0
    %v682 = vpop.f32.mrf.mxu0
    %v683 = vpop.f32.mrf.mxu0
    %684 = vdwg.mxu0
    %685 = vmatprep.subr.bf16.mxu0 0
    %686 = vmatpush1.bf16.msra.mxu0 %v540
    %687 = vmatprep.subr.bf16.mxu0 0
    %688 = vmatpush1.bf16.msra.mxu0 %v539
    %689 = vmatprep.subr.bf16.mxu0 0
    %690 = vmatpush1.bf16.msra.mxu0 %v538
    %691 = vmatprep.subr.bf16.mxu0 0
    %692 = vmatpush1.bf16.msra.mxu0 %v537
    %693 = vmatprep.subr.bf16.mxu0 0
    %694 = vmatpush1.bf16.msra.mxu0 %v536
    %695 = vmatprep.subr.bf16.mxu0 0
    %696 = vmatpush1.bf16.msra.mxu0 %v535
    %697 = vmatprep.subr.bf16.mxu0 0
    %698 = vmatpush1.bf16.msra.mxu0 %v534
    %699 = vmatprep.subr.bf16.mxu0 0
    %700 = vmatpush1.bf16.msra.mxu0 %v533
    %701 = vmatprep.subr.bf16.mxu0 0
    %702 = vmatpush2.bf16.msra.mxu0 %v548
    %703 = vmatprep.subr.bf16.mxu0 0
    %704 = vmatpush2.bf16.msra.mxu0 %v547
    %705 = vmatprep.subr.bf16.mxu0 0
    %706 = vmatpush2.bf16.msra.mxu0 %v546
    %707 = vmatprep.subr.bf16.mxu0 0
    %708 = vmatpush2.bf16.msra.mxu0 %v545
    %709 = vmatprep.subr.bf16.mxu0 0
    %710 = vmatpush2.bf16.msra.mxu0 %v544
    %711 = vmatprep.subr.bf16.mxu0 0
    %712 = vmatpush2.bf16.msra.mxu0 %v543
    %713 = vmatprep.subr.bf16.mxu0 0
    %714 = vmatpush2.bf16.msra.mxu0 %v542
    %715 = vmatprep.subr.bf16.mxu0 0
    %716 = vmatpush2.bf16.msra.mxu0 %v541
    %717 = vmatprep.mubr.bf16.mxu0 %v121
    %718 = vmatmul.mubr.bf16.gmra.mxu0 %v120
    %v719 = vpop.f32.mrf.mxu0
    %v720 = vadd.f32 %v680, %v719
    %v721 = vpop.f32.mrf.mxu0
    %v722 = vpop.f32.mrf.mxu0
    %v723 = vpop.f32.mrf.mxu0
    %724 = vdwg.mxu0
    %725 = vmatprep.subr.bf16.mxu0 0
    %726 = vmatpush1.bf16.msra.mxu0 %v556
    %727 = vmatprep.subr.bf16.mxu0 0
    %728 = vmatpush1.bf16.msra.mxu0 %v555
    %729 = vmatprep.subr.bf16.mxu0 0
    %730 = vmatpush1.bf16.msra.mxu0 %v554
    %731 = vmatprep.subr.bf16.mxu0 0
    %732 = vmatpush1.bf16.msra.mxu0 %v553
    %733 = vmatprep.subr.bf16.mxu0 0
    %734 = vmatpush1.bf16.msra.mxu0 %v552
    %735 = vmatprep.subr.bf16.mxu0 0
    %736 = vmatpush1.bf16.msra.mxu0 %v551
    %737 = vmatprep.subr.bf16.mxu0 0
    %738 = vmatpush1.bf16.msra.mxu0 %v550
    %739 = vmatprep.subr.bf16.mxu0 0
    %740 = vmatpush1.bf16.msra.mxu0 %v549
    %741 = vmatprep.subr.bf16.mxu0 0
    %742 = vmatpush2.bf16.msra.mxu0 %v564
    %743 = vmatprep.subr.bf16.mxu0 0
    %744 = vmatpush2.bf16.msra.mxu0 %v563
    %745 = vmatprep.subr.bf16.mxu0 0
    %746 = vmatpush2.bf16.msra.mxu0 %v562
    %747 = vmatprep.subr.bf16.mxu0 0
    %748 = vmatpush2.bf16.msra.mxu0 %v561
    %749 = vmatprep.subr.bf16.mxu0 0
    %750 = vmatpush2.bf16.msra.mxu0 %v560
    %751 = vmatprep.subr.bf16.mxu0 0
    %752 = vmatpush2.bf16.msra.mxu0 %v559
    %753 = vmatprep.subr.bf16.mxu0 0
    %754 = vmatpush2.bf16.msra.mxu0 %v558
    %755 = vmatprep.subr.bf16.mxu0 0
    %756 = vmatpush2.bf16.msra.mxu0 %v557
    %757 = vmatprep.mubr.bf16.mxu0 %v123
    %758 = vmatmul.mubr.bf16.gmra.mxu0 %v122
    %v759 = vpop.f32.mrf.mxu0
    %v760 = vadd.f32 %v720, %v759
    %v761 = vpop.f32.mrf.mxu0
    %v762 = vpop.f32.mrf.mxu0
    %v763 = vpop.f32.mrf.mxu0
    %764 = vdwg.mxu0
    %765 = vmatprep.subr.bf16.mxu0 0
    %766 = vmatpush1.bf16.msra.mxu0 %v572
    %767 = vmatprep.subr.bf16.mxu0 0
    %768 = vmatpush1.bf16.msra.mxu0 %v571
    %769 = vmatprep.subr.bf16.mxu0 0
    %770 = vmatpush1.bf16.msra.mxu0 %v570
    %771 = vmatprep.subr.bf16.mxu0 0
    %772 = vmatpush1.bf16.msra.mxu0 %v569
    %773 = vmatprep.subr.bf16.mxu0 0
    %774 = vmatpush1.bf16.msra.mxu0 %v568
    %775 = vmatprep.subr.bf16.mxu0 0
    %776 = vmatpush1.bf16.msra.mxu0 %v567
    %777 = vmatprep.subr.bf16.mxu0 0
    %778 = vmatpush1.bf16.msra.mxu0 %v566
    %779 = vmatprep.subr.bf16.mxu0 0
    %780 = vmatpush1.bf16.msra.mxu0 %v565
    %781 = vmatprep.subr.bf16.mxu0 0
    %782 = vmatpush2.bf16.msra.mxu0 %v580
    %783 = vmatprep.subr.bf16.mxu0 0
    %784 = vmatpush2.bf16.msra.mxu0 %v579
    %785 = vmatprep.subr.bf16.mxu0 0
    %786 = vmatpush2.bf16.msra.mxu0 %v578
    %787 = vmatprep.subr.bf16.mxu0 0
    %788 = vmatpush2.bf16.msra.mxu0 %v577
    %789 = vmatprep.subr.bf16.mxu0 0
    %790 = vmatpush2.bf16.msra.mxu0 %v576
    %791 = vmatprep.subr.bf16.mxu0 0
    %792 = vmatpush2.bf16.msra.mxu0 %v575
    %793 = vmatprep.subr.bf16.mxu0 0
    %794 = vmatpush2.bf16.msra.mxu0 %v574
    %795 = vmatprep.subr.bf16.mxu0 0
    %796 = vmatpush2.bf16.msra.mxu0 %v573
    %797 = vmatprep.mubr.bf16.mxu0 %v125
    %798 = vmatmul.mubr.bf16.gmra.mxu0 %v124
    %v799 = vpop.f32.mrf.mxu0
    %v800 = vadd.f32 %v760, %v799
    %v801 = vpop.f32.mrf.mxu0
    %v802 = vpop.f32.mrf.mxu0
    %v803 = vpop.f32.mrf.mxu0
    %804 = vdwg.mxu0
    %v805 = vmax.f32 %v800, 0.0
    %v806 = vld [vmem:[%s3] sm:$0xff]
    %v807 = vld [vmem:[%s3 + $0x8] sm:$0xff]
    %v808 = vld [vmem:[%s3 + $0x10] sm:$0xff]
    %v809 = vld [vmem:[%s3 + $0x18] sm:$0xff]
    %v810 = vld [vmem:[%s4] sm:$0x1]
    %v812 = vlaneseq
    %v813 = vshrl.u32 %v812, 7
    %v814 = vsub.s32 0, %v813
    %v815 = vrot.slane %v810, %v814
    %vm817 = vcmask 261120
    %v819 = vsel %vm817, %v805, 0
    %821 = vmatprep.subr.mxu0 0.0
    %822 = vmatpush1.msra.mxu0 0.0
    %823 = vmatprep.subr.mxu0 0.0
    %824 = vmatpush1.msra.mxu0 0.0
    %825 = vmatprep.subr.mxu0 0.0
    %826 = vmatpush1.msra.mxu0 0.0
    %827 = vmatprep.subr.mxu0 0.0
    %828 = vmatpush1.msra.mxu0 0.0
    %829 = vmatprep.subr.mxu0 0.0
    %830 = vmatpush1.msra.mxu0 0.0
    %831 = vmatprep.subr.mxu0 0.0
    %832 = vmatpush1.msra.mxu0 0.0
    %833 = vmatprep.subr.mxu0 0.0
    %834 = vmatpush1.msra.mxu0 0.0
    %835 = vmatprep.subr.mxu0 0.0
    %836 = vmatpush1.msra.mxu0 0.0
    %837 = vmatprep.subr.mxu0 0.0
    %838 = vmatpush1.msra.mxu0 0.0
    %839 = vmatprep.subr.mxu0 0.0
    %840 = vmatpush1.msra.mxu0 0.0
    %841 = vmatprep.subr.mxu0 0.0
    %842 = vmatpush1.msra.mxu0 0.0
    %843 = vmatprep.subr.mxu0 0.0
    %844 = vmatpush1.msra.mxu0 0.0
    %845 = vmatprep.subr.mxu0 0.0
    %846 = vmatpush1.msra.mxu0 %v809
    %847 = vmatprep.subr.mxu0 0.0
    %848 = vmatpush1.msra.mxu0 %v808
    %849 = vmatprep.subr.mxu0 0.0
    %850 = vmatpush1.msra.mxu0 %v807
    %851 = vmatprep.subr.mxu0 0.0
    %852 = vmatpush1.msra.mxu0 %v806
    %853 = vmatprep.subr.mxu0 0.0
    %854 = vmatpush2.msra.mxu0 0.0
    %855 = vmatprep.subr.mxu0 0.0
    %856 = vmatpush2.msra.mxu0 0.0
    %857 = vmatprep.subr.mxu0 0.0
    %858 = vmatpush2.msra.mxu0 0.0
    %859 = vmatprep.subr.mxu0 0.0
    %860 = vmatpush2.msra.mxu0 0.0
    %861 = vmatprep.subr.mxu0 0.0
    %862 = vmatpush2.msra.mxu0 0.0
    %863 = vmatprep.subr.mxu0 0.0
    %864 = vmatpush2.msra.mxu0 0.0
    %865 = vmatprep.subr.mxu0 0.0
    %866 = vmatpush2.msra.mxu0 0.0
    %867 = vmatprep.subr.mxu0 0.0
    %868 = vmatpush2.msra.mxu0 0.0
    %869 = vmatprep.subr.mxu0 0.0
    %870 = vmatpush2.msra.mxu0 0.0
    %871 = vmatprep.subr.mxu0 0.0
    %872 = vmatpush2.msra.mxu0 0.0
    %873 = vmatprep.subr.mxu0 0.0
    %874 = vmatpush2.msra.mxu0 0.0
    %875 = vmatprep.subr.mxu0 0.0
    %876 = vmatpush2.msra.mxu0 0.0
    %877 = vmatprep.subr.mxu0 0.0
    %878 = vmatpush2.msra.mxu0 0.0
    %879 = vmatprep.subr.mxu0 0.0
    %880 = vmatpush2.msra.mxu0 0.0
    %881 = vmatprep.subr.mxu0 0.0
    %882 = vmatpush2.msra.mxu0 0.0
    %883 = vmatprep.subr.mxu0 0.0
    %884 = vmatpush2.msra.mxu0 0.0
    %885 = vmatprep.mubr.f32.mxu0 0.0
    %886 = vmatmul.mubr.f32.gmra.mxu0 %v819
    %v887 = vpop.f32.mrf.mxu0
    %v888 = vadd.f32 %v815, %v887
    %v889 = vpop.f32.mrf.mxu0
    %890 = vdwg.mxu0
    %vm891 = vcmask 64512
    %v892 = vsel %vm891, %v888, -inf
    %893 = vmax.xlane.f32.xlu0 %v892
    %v894 = vpop.xlane.xlu0 %893
    %v895 = vsub.f32 %v888, %v894
    %v896 = vmul.f32 %v895, 1.442695
    %v897 = vpow.pop %v896
    %v898 = vsel %vm891, %v897, 0.0
    %899 = vadd.xlane.f32.xlu0 %v898
    %v900 = vpop.xlane.xlu0 %899
    %v901 = vrcp.pop %v900
    %v902 = vmul.f32 %v897, %v901
    %903 = vst.msk [vmem:[#allocation2] sm:$0xff] %vm891, %v902
    // Predicated region
    $region22: #{tpu_custom_call.1} parent=1 // pred_check
      _
    $region23: #{tpu_custom_call.1} parent=1 // pred_check_branch
      %905 = sbr.rel (0) target = $region25
    $region24: #{tpu_custom_call.1} parent=1 // pred_region
      %s907 = ssub.s32 128, 32
      %908 = vsyncadd [#allocation3], %s907
      %s909 = sshll.u32 [#allocation2], 4
      %s910 = int_to_ptr.vmem [resolvable:$true] %s909
      %915 = dma.vmem_to_hbm [thread:$0]  %s910, 32, %s5, [#allocation3], 32, 32, 2
    $region25: #{tpu_custom_call.1} parent=1 // pred_fallthru
      _
    // Predicated region
    $region26: #{tpu_custom_call.1} parent=1 // pred_check
      _
    $region27: #{tpu_custom_call.1} parent=1 // pred_check_branch
      %917 = sbr.rel (0) target = $region29
    $region28: #{tpu_custom_call.1} parent=1 // pred_region
      %918 = dma.done [#allocation3], 128
    $region29: #{tpu_custom_call.1} parent=1 // pred_fallthru
      _
    %919 = vsyncpa [#allocation3], 1

</llo_original>
